<compile_context>
chip_gen: v5e
topology: v5e:2x2
jax: 0.10.0
libtpu: 0.0.40
codegen_flags: <defaults>
</compile_context>

<pallas_src>
import math
from functools import partial

import jax
import jax.numpy as jnp
import numpy as np
from jax import lax
from jax.experimental import pallas as pl
from jax.experimental.pallas import tpu as pltpu


# ----------------------------------------------------------------------------
# Parameter setup (equivalent of PositionalEncoding.__init__) -- plain JAX glue.
# ----------------------------------------------------------------------------
def make_pos_embedding(emb_size: int, maxlen: int = 5000, dtype=jnp.float32):
    den = jnp.exp(
        -jnp.arange(0, emb_size, 2, dtype=jnp.float32) * math.log(10000.0) / emb_size
    )
    pos = jnp.arange(0, maxlen, dtype=jnp.float32).reshape(maxlen, 1)
    pe = jnp.zeros((maxlen, emb_size), dtype=jnp.float32)
    pe = pe.at[:, 0::2].set(jnp.sin(pos * den))
    pe = pe.at[:, 1::2].set(jnp.cos(pos * den))
    # torch stores (maxlen, 1, emb_size); we keep (maxlen, emb_size) and do the
    # batch broadcast inside the kernel.
    return pe.astype(dtype)


# ----------------------------------------------------------------------------
# Helpers
# ----------------------------------------------------------------------------
def _round_up(x: int, m: int) -> int:
    return (x + m - 1) // m * m


def _vmem_capacity_bytes() -> int:
    """Per-generation VMEM capacity; conservative (v7x per-TC) fallback."""
    try:
        return int(pltpu.get_tpu_info().vmem_capacity_bytes)
    except Exception:
        return 64 * 1024 * 1024


# ----------------------------------------------------------------------------
# Kernels
# ----------------------------------------------------------------------------
def _pe_kernel_eval(x_ref, pos_ref, o_ref, *, batch_rep):
    # Lane-dense add: x block (tile_s, tile_be), pos block (tile_s, E) broadcast
    # over batch by tiling along the lane axis (hidden under DMA; mem-bound op).
    pos_b = jnp.tile(pos_ref[...], (1, batch_rep))
    o_ref[...] = x_ref[...] + pos_b


def _pe_kernel_train(seed_ref, x_ref, pos_ref, o_ref, *,
                     batch_rep, tile_s, tile_be, row_stride,
                     keep_threshold, inv_keep):
    # Training-mode inverted dropout using a stateless counter-based PRNG
    # (splitmix32 finalizer) -> lowers on TPU and in interpret mode, and the
    # mask depends only on (seed, global element index), not on tiling.
    # TODO(synk): not bit-identical to torch's dropout RNG stream; 32-bit
    # counter assumes < 2^31 elements. Caller must vary `seed` per step.
    y = x_ref[...] + jnp.tile(pos_ref[...], (1, batch_rep))

    i = pl.program_id(0)
    j = pl.program_id(1)
    row = lax.broadcasted_iota(jnp.int32, y.shape, 0) + i * tile_s
    col = lax.broadcasted_iota(jnp.int32, y.shape, 1) + j * tile_be

    ctr = (row.astype(jnp.uint32) * jnp.uint32(row_stride)
           + col.astype(jnp.uint32)
           + seed_ref[0].astype(jnp.uint32) * jnp.uint32(0x9E3779B9))
    ctr = ctr ^ (ctr >> jnp.uint32(16))
    ctr = ctr * jnp.uint32(0x7FEB352D)
    ctr = ctr ^ (ctr >> jnp.uint32(15))
    ctr = ctr * jnp.uint32(0x846CA68B)
    ctr = ctr ^ (ctr >> jnp.uint32(16))

    bits31 = ctr & jnp.uint32(0x7FFFFFFF)            # 31 random bits (signed-safe)
    keep = bits31 >= jnp.uint32(keep_threshold)      # P(keep) = 1 - dropout_p
    # Scale in f32 and cast once (avoids systematic bf16 rounding of 1/(1-p)).
    scaled = (y.astype(jnp.float32) * jnp.float32(inv_keep)).astype(o_ref.dtype)
    o_ref[...] = jnp.where(keep, scaled, jnp.zeros_like(scaled))


# ----------------------------------------------------------------------------
# Wrapper (equivalent of PositionalEncoding.forward)
# ----------------------------------------------------------------------------
def positional_encoding(
    x,                      # (S, B, E) token embeddings
    pos_emb,                # (maxlen, E) positional table
    *,
    dropout_p: float = 0.1,
    training: bool = False,
    seed: int = 0,
    tile_s: int | None = None,
):
    S, B, E = x.shape
    BE = B * E
    dtype = x.dtype
    dtype_bytes = jnp.dtype(dtype).itemsize

    if training and dropout_p >= 1.0:
        # torch nn.Dropout(p=1.0) zeros everything (avoid inf scale).
        return jnp.zeros_like(x)
    use_dropout = training and dropout_p > 0.0

    # ---- block sizing: target ~2-4 MiB blocks within the per-gen VMEM budget ----
    vmem_cap = _vmem_capacity_bytes()
    target_block_bytes = int(min(4 << 20, max(2 << 20, vmem_cap // 24)))

    # Lane-axis tiling only if even a tile_s=8 full-width slab blows the budget
    # (very large B*E, relevant on v7x's 64 MiB VMEM).  Split at batch
    # boundaries so the pos broadcast stays a simple lane-tile.
    tile_be = BE
    if 8 * BE * dtype_bytes > target_block_bytes:
        for gb in range(B - 1, 0, -1):
            if B % gb:
                continue
            cand = gb * E
            if cand % 128 != 0:                 # lane-tiling (8,128) constraint
                continue
            if 8 * cand * dtype_bytes <= target_block_bytes:
                tile_be = cand
                break
    batch_rep = tile_be // E

    row_bytes = tile_be * dtype_bytes
    if tile_s is None:
        tile_s = max(8, (target_block_bytes // max(row_bytes, 1)) // 8 * 8)
    else:
        tile_s = max(8, _round_up(tile_s, 8))
    if S > 8 and BE // tile_be == 1:
        # Guarantee >=2 grid programs so both v7x TensorCores get work.
        tile_s = min(tile_s, _round_up((S + 1) // 2, 8))
    tile_s = min(tile_s, _round_up(S, 8))

    grid = (pl.cdiv(S, tile_s), BE // tile_be)   # ragged tail handled by Pallas

    # ---- lane-dense 2D layout: (S, B*E); pos stays (S, E) ----
    x2 = x.reshape(S, BE)
    pos = pos_emb[:S].astype(dtype)              # pos_embedding[:token_embedding.size(0)]

    block_bytes = tile_s * tile_be * dtype_bytes
    vmem_limit = int(min(vmem_cap, max(32 << 20, 10 * block_bytes)))

    compiler_params = pltpu.CompilerParams(
        dimension_semantics=("parallel", "parallel"),   # shard across TCs on v7x
        vmem_limit_bytes=vmem_limit,
    )
    cost = pl.CostEstimate(
        flops=(4 if use_dropout else 1) * S * BE,
        transcendentals=0,
        bytes_accessed=(2 * S * BE + S * E) * dtype_bytes,   # x + out + pos
    )
    out_shape = jax.ShapeDtypeStruct((S, BE), dtype)
    x_blk = (tile_s, tile_be)
    pos_blk = (tile_s, E)

    if use_dropout:
        thr = min(max(int(round(dropout_p * (1 << 31))), 1), (1 << 31) - 1)
        seed_arr = jnp.asarray([seed], dtype=jnp.int32)
        grid_spec = pltpu.PrefetchScalarGridSpec(
            num_scalar_prefetch=1,
            grid=grid,
            in_specs=[
                pl.BlockSpec(x_blk, lambda i, j, seed_ref: (i, j)),
                pl.BlockSpec(pos_blk, lambda i, j, seed_ref: (i, 0)),
            ],
            out_specs=pl.BlockSpec(x_blk, lambda i, j, seed_ref: (i, j)),
        )
        out2 = pl.pallas_call(
            partial(_pe_kernel_train,
                    batch_rep=batch_rep, tile_s=tile_s, tile_be=tile_be,
                    row_stride=BE, keep_threshold=thr,
                    inv_keep=1.0 / (1.0 - dropout_p)),
            out_shape=out_shape,
            grid_spec=grid_spec,
            compiler_params=compiler_params,
            cost_estimate=cost,
        )(seed_arr, x2, pos)
    else:
        grid_spec = pltpu.PrefetchScalarGridSpec(
            num_scalar_prefetch=0,
            grid=grid,
            in_specs=[
                pl.BlockSpec(x_blk, lambda i, j: (i, j)),
                pl.BlockSpec(pos_blk, lambda i, j: (i, 0)),
            ],
            out_specs=pl.BlockSpec(x_blk, lambda i, j: (i, j)),
        )
        out2 = pl.pallas_call(
            partial(_pe_kernel_eval, batch_rep=batch_rep),
            out_shape=out_shape,
            grid_spec=grid_spec,
            compiler_params=compiler_params,
            cost_estimate=cost,
        )(x2, pos)

    return out2.reshape(S, B, E)


# ----------------------------------------------------------------------------
# Demo / self-check
# ----------------------------------------------------------------------------
if __name__ == "__main__":
    emb_size = 32
    maxlen = 64
    seq_len = 16
    batch = 2
    dropout = 0.1

    key = jax.random.PRNGKey(0)
    x = jax.random.normal(key, (seq_len, batch, emb_size), dtype=jnp.float32)
    pos_emb = make_pos_embedding(emb_size, maxlen)

    # eval-mode forward (dropout == identity)
    out = positional_encoding(x, pos_emb, dropout_p=dropout, training=False)
    out = jax.block_until_ready(out)

    ref = x + pos_emb[:seq_len][:, None, :]
    np.testing.assert_allclose(np.asarray(out), np.asarray(ref), rtol=1e-6, atol=1e-6)

    # training-mode forward: kept entries must equal (x + pos) / (1 - p)
    out_tr = positional_encoding(x, pos_emb, dropout_p=dropout, training=True, seed=123)
    out_tr = jax.block_until_ready(out_tr)
    out_tr_np = np.asarray(out_tr)
    ref_scaled = np.asarray(ref) / (1.0 - dropout)
    kept = out_tr_np != 0.0
    np.testing.assert_allclose(out_tr_np[kept], ref_scaled[kept], rtol=1e-5, atol=1e-5)
    keep_frac = kept.mean()
    assert 0.5 < keep_frac < 0.999, f"suspicious keep fraction {keep_frac}"
    assert out_tr_np.shape == (seq_len, batch, emb_size)

    print("KERNEL_OK")
</pallas_src>

<mosaic_0001>
module attributes {stable_mosaic.version = 11 : i64} {
  func.func @_pe_kernel_eval(%arg0: i32, %arg1: i32, %arg2: memref<8x64xf32, #tpu.memory_space<vmem>>, %arg3: memref<8x32xf32, #tpu.memory_space<vmem>>, %arg4: memref<8x64xf32, #tpu.memory_space<vmem>>) attributes {dimension_semantics = [#tpu.dimension_semantics<parallel>, #tpu.dimension_semantics<parallel>], iteration_bounds = array<i64: 2, 1>, scalar_prefetch = 0 : i64, scratch_operands = 0 : i64, tpu.core_type = #tpu.core_type<tc>, window_params = [{transform_indices = @transform_0, window_bounds = array<i64: 8, 64>}, {transform_indices = @transform_1, window_bounds = array<i64: 8, 32>}, {transform_indices = @transform_2, window_bounds = array<i64: 8, 64>}]} {
    %c0 = arith.constant 0 : index
    %c0_0 = arith.constant 0 : index
    %0 = vector.load %arg3[%c0, %c0_0] : memref<8x32xf32, #tpu.memory_space<vmem>>, vector<8x32xf32>
    %1 = tpu.concatenate %0, %0 in 1 : vector<8x32xf32>, vector<8x32xf32> -> vector<8x64xf32>
    %c0_1 = arith.constant 0 : index
    %c0_2 = arith.constant 0 : index
    %2 = vector.load %arg2[%c0_1, %c0_2] : memref<8x64xf32, #tpu.memory_space<vmem>>, vector<8x64xf32>
    %3 = arith.addf %2, %1 : vector<8x64xf32>
    %c0_3 = arith.constant 0 : index
    %c0_4 = arith.constant 0 : index
    %4 = vector.load %arg4[%c0_3, %c0_4] : memref<8x64xf32, #tpu.memory_space<vmem>>, vector<8x64xf32>
    tpu.vector_store %arg4[%c0_3, %c0_4], %3 {strides = array<i32>} : memref<8x64xf32, #tpu.memory_space<vmem>>, vector<8x64xf32>,
    return
  }
  func.func @transform_0(%arg0: i32, %arg1: i32) -> (i32, i32) {
    %c0_i32 = arith.constant 0 : i32
    return %arg0, %arg1 : i32, i32
  }
  func.func @transform_1(%arg0: i32, %arg1: i32) -> (i32, i32) {
    %c0_i32 = arith.constant 0 : i32
    %c0_i32_0 = arith.constant 0 : i32
    return %arg0, %c0_i32 : i32, i32
  }
  func.func @transform_2(%arg0: i32, %arg1: i32) -> (i32, i32) {
    %c0_i32 = arith.constant 0 : i32
    return %arg0, %arg1 : i32, i32
  }
}

</mosaic_0001>

<llo_original>
// kernel: tpu_custom_call.1
$region0: #{tpu_custom_call.1}
  #allocation0 [shape = 'u32[]', space=smem, size = 0x4, offset = 0x4, fixed_abs, tag = 'smem constant byte address 0x4 - core index']
  #allocation1 [shape = 'u32[72,128]{1,0:T(1,128)}', space=vmem, size = 0x9000, scoped, tag = 'internal scratch']
  %s0 = inlined_call_operand.hbm [shape: f32[16,64], index: 0, kind: input, shape index: {}]
  %s1 = inlined_call_operand.hbm [shape: f32[16,32], index: 1, kind: input, shape index: {}]
  %s2 = inlined_call_operand.hbm [shape: f32[16,64], index: 2, kind: output, shape index: {}]
  %s3 = sld [smem:[#allocation0]]
  $region49: #{tpu_custom_call.1} parent=0
    _
  %s5 = ssub.s32 1, %s3
  %s6 = scalar_select 0, %s5, %s3
  $region1: #{tpu_custom_call.1} parent=0
    #allocation2 [shape = 'u8[8192]{0}', space=vmem, size = 0x2000, scoped, tag = 'input window, operand 0']
    #allocation3 [shape = 's32[2]{0}', space=sflag, size = 0x8, scoped, tag = 'scoped memory for tpu_custom_call.1']
    #allocation4 [shape = 's32[2]{0}', space=sflag, size = 0x8, scoped, tag = 'scoped memory for tpu_custom_call.1']
    #allocation5 [shape = 'u8[8192]{0}', space=vmem, size = 0x2000, scoped, tag = 'input window, operand 1']
    #allocation6 [shape = 's32[2]{0}', space=sflag, size = 0x8, scoped, tag = 'scoped memory for tpu_custom_call.1']
    #allocation7 [shape = 'u8[8192]{0}', space=vmem, size = 0x2000, scoped, tag = 'output window, operand 0']
    %7 = vsyncpa [#allocation3], 0
    %s8 = scalar_lea.sflag [#allocation3], 1
    %9 = vsyncpa %s8, 0
    %10 = vsyncpa [#allocation6], 0
    %s11 = scalar_lea.sflag [#allocation6], 1
    %12 = vsyncpa %s11, 0
    %13 = vsyncpa [#allocation4], 0
    %s14 = scalar_lea.sflag [#allocation4], 1
    %15 = vsyncpa %s14, 0
    loop: start=0, step=1, limit=4
    $region2: #{tpu_custom_call.1} parent=1 // loop_pre_header
      _
    $region3: #{tpu_custom_call.1} parent=1 // loop_header
      %s17 = sphi 0, %s21
      %p18 = scmp.ge.s32.totalorder %s17, 4
      %s24 = sphi 0, %s36
      %s25 = sphi 0, %s32
      %s26 = sphi 0, %s24
      %s27 = sphi 0, %s25
      %s28 = sphi 0, %s26
      %s29 = sphi 0, %s27
      %s41 = sphi 0, %s43
      %s44 = sphi 0, %s41
      %s45 = sphi 0, %s44
      %s61 = sphi 0, %s45
      %s67 = sphi 0, %s69
      %s70 = sphi 0, %s67
      %s71 = sphi 0, %s70
      %s87 = sphi 0, %s71
      %s95 = sphi 0, %s97
      %s98 = sphi 0, %s95
      %s99 = sphi 0, %s98
      %s115 = sphi 0, %s99
    $region4: #{tpu_custom_call.1} parent=1 // loop_header_branch
      %20 = sbr.rel (%p18) target = $region8
    $region5: #{tpu_custom_call.1} parent=1 // loop_body
      %s22 = ssub.s32 %s17, 1
      %s23 = ssub.s32 %s17, 2
      %s30 = sadd.s32 1, %s25
      %p31 = scmp.ge.s32.totalorder %s30, 1
      %s32 = scalar_select %p31, 0, %s30
      %s33 = sadd.s32 1, %s24
      %s34 = scalar_select %p31, %s33, %s24
      %p35 = scmp.ge.s32.totalorder %s34, 2
      %s36 = scalar_select %p35, 0, %s34
      %s37 = ssub.s32 %s24, %s36
      %s38 = ssub.s32 %s25, %s32
      %s39 = sor.u32 %s37, %s38
      %p40 = scmp.eq.s32.totalorder %s39, 0
      %s42 = sadd.s32 %s41, 1
      %s43 = scalar_select %p40, %s41, %s42
      %p46 = pneg %p40
      %p47 = scmp.eq.s32.totalorder %s17, 1
      %p48 = por %p46, %p47
      %p49 = scmp.ne.s32.totalorder %s41, %s44
      %p50 = scmp.eq.s32.totalorder %s17, 0
      %p51 = por %p49, %p50
      %p52 = scmp.ne.s32.totalorder %s41, %s44
      %p53 = scmp.eq.s32.totalorder %s22, 1
      %p54 = por %p52, %p53
      %p55 = scmp.ne.s32.totalorder %s44, %s45
      %p56 = scmp.eq.s32.totalorder %s22, 0
      %p57 = por %p55, %p56
      %p58 = scmp.ne.s32.totalorder %s44, %s45
      %p59 = scmp.eq.s32.totalorder %s23, 1
      %p60 = por %p58, %p59
      %p62 = scmp.ne.s32.totalorder %s45, %s61
      %p63 = scmp.eq.s32.totalorder %s23, 0
      %p64 = por %p62, %p63
      %s65 = ssub.s32 %s24, %s36
      %p66 = scmp.eq.s32.totalorder %s65, 0
      %s68 = sadd.s32 %s67, 1
      %s69 = scalar_select %p66, %s67, %s68
      %p72 = pneg %p66
      %p73 = scmp.eq.s32.totalorder %s17, 1
      %p74 = por %p72, %p73
      %p75 = scmp.ne.s32.totalorder %s67, %s70
      %p76 = scmp.eq.s32.totalorder %s17, 0
      %p77 = por %p75, %p76
      %p78 = scmp.ne.s32.totalorder %s67, %s70
      %p79 = scmp.eq.s32.totalorder %s22, 1
      %p80 = por %p78, %p79
      %p81 = scmp.ne.s32.totalorder %s70, %s71
      %p82 = scmp.eq.s32.totalorder %s22, 0
      %p83 = por %p81, %p82
      %p84 = scmp.ne.s32.totalorder %s70, %s71
      %p85 = scmp.eq.s32.totalorder %s23, 1
      %p86 = por %p84, %p85
      %p88 = scmp.ne.s32.totalorder %s71, %s87
      %p89 = scmp.eq.s32.totalorder %s23, 0
      %p90 = por %p88, %p89
      %s91 = ssub.s32 %s24, %s36
      %s92 = ssub.s32 %s25, %s32
      %s93 = sor.u32 %s91, %s92
      %p94 = scmp.eq.s32.totalorder %s93, 0
      %s96 = sadd.s32 %s95, 1
      %s97 = scalar_select %p94, %s95, %s96
      %p100 = pneg %p94
      %p101 = scmp.eq.s32.totalorder %s17, 1
      %p102 = por %p100, %p101
      %p103 = scmp.ne.s32.totalorder %s95, %s98
      %p104 = scmp.eq.s32.totalorder %s17, 0
      %p105 = por %p103, %p104
      %p106 = scmp.ne.s32.totalorder %s95, %s98
      %p107 = scmp.eq.s32.totalorder %s22, 1
      %p108 = por %p106, %p107
      %p109 = scmp.ne.s32.totalorder %s98, %s99
      %p110 = scmp.eq.s32.totalorder %s22, 0
      %p111 = por %p109, %p110
      %p112 = scmp.ne.s32.totalorder %s98, %s99
      %p113 = scmp.eq.s32.totalorder %s23, 1
      %p114 = por %p112, %p113
      %p116 = scmp.ne.s32.totalorder %s99, %s115
      %p117 = scmp.eq.s32.totalorder %s23, 0
      %p118 = por %p116, %p117
      %p119 = scmp.le.s32.totalorder 1, %s17
      %p120 = scmp.lt.s32.totalorder %s17, 3
      %p121 = pnand %p119, %p120
      %p122 = pneg %p121
      // Predicated region
      $region9: #{tpu_custom_call.1} parent=5 // pred_check
        _
      $region10: #{tpu_custom_call.1} parent=5 // pred_check_branch
        %124 = sbr.rel (%p121) target = $region12
      $region11: #{tpu_custom_call.1} parent=5 // pred_region
        %s125 = ssub.s32 %s17, 1
      $region12: #{tpu_custom_call.1} parent=5 // pred_fallthru
        _
      %p126 = scmp.lt.s32.totalorder %s17, 2
      // Predicated region
      $region13: #{tpu_custom_call.1} parent=5 // pred_check
        %p127 = pneg %p126
      $region14: #{tpu_custom_call.1} parent=5 // pred_check_branch
        %129 = sbr.rel (%p127) target = $region16
      $region15: #{tpu_custom_call.1} parent=5 // pred_region
        // Predicated region
        $region17: #{tpu_custom_call.1} parent=15 // pred_check
          %p130 = pneg %p51
        $region18: #{tpu_custom_call.1} parent=15 // pred_check_branch
          %132 = sbr.rel (%p130) target = $region20
        $region19: #{tpu_custom_call.1} parent=15 // pred_region
          %s133 = sand.u32 %s41, 1
          %s134 = scalar_lea.sflag [#allocation3], %s133
          %s135 = sand.u32 %s41, 1
          %s136 = smul.addr %s135, 8
          %s137 = scalar_lea.vmem [#allocation2], %s136
          %139 = vsyncadd %s134, 0
          %s140 = sadd.s32 %s25, %s24
          %s141 = smul.addr %s140, 8
          %s142 = scalar_lea.hbm %s0, %s141
          %s144 = sshll.u32 %s142, 4
          %s145 = int_to_ptr.hbm [resolvable:$true] %s144
          %s146 = sshll.u32 %s137, 4
          %s147 = int_to_ptr.vmem [resolvable:$true] %s146
          %149 = dma.hbm_to_vmem [thread:$0]  %s145, 128, %s147, %s134
        $region20: #{tpu_custom_call.1} parent=15 // pred_fallthru
          _
        // Predicated region
        $region21: #{tpu_custom_call.1} parent=15 // pred_check
          %p150 = pneg %p77
        $region22: #{tpu_custom_call.1} parent=15 // pred_check_branch
          %152 = sbr.rel (%p150) target = $region24
        $region23: #{tpu_custom_call.1} parent=15 // pred_region
          %s153 = sand.u32 %s67, 1
          %s154 = scalar_lea.sflag [#allocation6], %s153
          %s155 = sand.u32 %s67, 1
          %s156 = smul.addr %s155, 8
          %s157 = scalar_lea.vmem [#allocation5], %s156
          %159 = vsyncadd %s154, 0
          %s160 = smul.addr %s24, 8
          %s161 = scalar_lea.hbm %s1, %s160
          %s163 = sshll.u32 %s161, 4
          %s164 = int_to_ptr.hbm [resolvable:$true] %s163
          %s165 = sshll.u32 %s157, 4
          %s166 = int_to_ptr.vmem [resolvable:$true] %s165
          %168 = dma.hbm_to_vmem [thread:$0]  %s164, 128, %s166, %s154
        $region24: #{tpu_custom_call.1} parent=15 // pred_fallthru
          _
      $region16: #{tpu_custom_call.1} parent=5 // pred_fallthru
        _
      %p169 = scmp.le.s32.totalorder 1, %s17
      %p170 = scmp.lt.s32.totalorder %s17, 3
      %p171 = pnand %p169, %p170
      %p172 = pneg %p171
      // Predicated region
      $region25: #{tpu_custom_call.1} parent=5 // pred_check
        _
      $region26: #{tpu_custom_call.1} parent=5 // pred_check_branch
        %174 = sbr.rel (%p171) target = $region28
      $region27: #{tpu_custom_call.1} parent=5 // pred_region
        %s175 = ssub.s32 %s17, 1
        %s176 = sand.u32 %s44, 1
        %s177 = scalar_lea.sflag [#allocation3], %s176
        %s178 = sand.u32 %s44, 1
        %s179 = smul.addr %s178, 8
        %s180 = scalar_lea.vmem [#allocation2], %s179
        // Predicated region
        $region29: #{tpu_custom_call.1} parent=27 // pred_check
          %p181 = pneg %p57
        $region30: #{tpu_custom_call.1} parent=27 // pred_check_branch
          %183 = sbr.rel (%p181) target = $region32
        $region31: #{tpu_custom_call.1} parent=27 // pred_region
          %185 = dma.done %s177, 128
        $region32: #{tpu_custom_call.1} parent=27 // pred_fallthru
          _
        %s186 = sand.u32 %s70, 1
        %s187 = scalar_lea.sflag [#allocation6], %s186
        %s188 = sand.u32 %s70, 1
        %s189 = smul.addr %s188, 8
        %s190 = scalar_lea.vmem [#allocation5], %s189
        // Predicated region
        $region33: #{tpu_custom_call.1} parent=27 // pred_check
          %p191 = pneg %p83
        $region34: #{tpu_custom_call.1} parent=27 // pred_check_branch
          %193 = sbr.rel (%p191) target = $region36
        $region35: #{tpu_custom_call.1} parent=27 // pred_region
          %195 = dma.done %s187, 128
        $region36: #{tpu_custom_call.1} parent=27 // pred_fallthru
          _
        %s196 = sand.u32 %s44, 1
        %s197 = scalar_lea.sflag [#allocation3], %s196
        %s198 = sand.u32 %s44, 1
        %s199 = smul.addr %s198, 8
        %s200 = scalar_lea.vmem [#allocation2], %s199
        %p201 = pneg %p57
        %p202 = pneg %p54
        %s203 = sand.u32 %s70, 1
        %s204 = scalar_lea.sflag [#allocation6], %s203
        %s205 = sand.u32 %s70, 1
        %s206 = smul.addr %s205, 8
        %s207 = scalar_lea.vmem [#allocation5], %s206
        %p208 = pneg %p83
        %p209 = pneg %p80
        %p210 = pneg %p111
        %p211 = pneg %p108
        %s212 = sand.u32 %s98, 1
        %s213 = scalar_lea.sflag [#allocation4], %s212
        %s214 = sand.u32 %s98, 1
        %s215 = smul.addr %s214, 8
        %s216 = scalar_lea.vmem [#allocation7], %s215
        %v217 = vld [vmem:[%s190] sm:$0xff]
        %219 = vrot.lane.b32.xlu0 %v217, 32
        %v220 = vpop.permute.xlu0 %219
        %vm222 = vcmask 261120
        %v223 = vsel %vm222, %v217, %v220
        %v224 = vld [vmem:[%s180] sm:$0xff]
        %v225 = vadd.f32 %v224, %v223
        %vm226 = vcmask 523264
        %227 = vst.msk [vmem:[%s216] sm:$0xff] %vm226, %v225
        %s228 = sand.u32 %s98, 1
        %s229 = scalar_lea.sflag [#allocation4], %s228
        %s230 = sand.u32 %s98, 1
        %s231 = smul.addr %s230, 8
        %s232 = scalar_lea.vmem [#allocation7], %s231
        // Predicated region
        $region37: #{tpu_custom_call.1} parent=27 // pred_check
          %p233 = pneg %p108
        $region38: #{tpu_custom_call.1} parent=27 // pred_check_branch
          %235 = sbr.rel (%p233) target = $region40
        $region39: #{tpu_custom_call.1} parent=27 // pred_region
          %237 = vsyncadd %s229, 0
          %s238 = sadd.s32 %s27, %s26
          %s239 = smul.addr %s238, 8
          %s240 = scalar_lea.hbm %s2, %s239
          %s242 = sshll.u32 %s232, 4
          %s243 = int_to_ptr.vmem [resolvable:$true] %s242
          %s244 = sshll.u32 %s240, 4
          %s245 = int_to_ptr.hbm [resolvable:$true] %s244
          %247 = dma.vmem_to_hbm [thread:$0]  %s243, 128, %s245, %s229
        $region40: #{tpu_custom_call.1} parent=27 // pred_fallthru
          _
      $region28: #{tpu_custom_call.1} parent=5 // pred_fallthru
        _
      %p248 = scmp.le.s32.totalorder 2, %s17
      // Predicated region
      $region41: #{tpu_custom_call.1} parent=5 // pred_check
        %p249 = pneg %p248
      $region42: #{tpu_custom_call.1} parent=5 // pred_check_branch
        %251 = sbr.rel (%p249) target = $region44
      $region43: #{tpu_custom_call.1} parent=5 // pred_region
        %s252 = ssub.s32 %s17, 2
        // Predicated region
        $region45: #{tpu_custom_call.1} parent=43 // pred_check
          %p253 = pneg %p114
        $region46: #{tpu_custom_call.1} parent=43 // pred_check_branch
          %255 = sbr.rel (%p253) target = $region48
        $region47: #{tpu_custom_call.1} parent=43 // pred_region
          %s256 = sand.u32 %s99, 1
          %s257 = scalar_lea.sflag [#allocation4], %s256
          %s258 = sand.u32 %s99, 1
          %s259 = smul.addr %s258, 8
          %s260 = scalar_lea.vmem [#allocation7], %s259
          %262 = dma.done %s257, 128
        $region48: #{tpu_custom_call.1} parent=43 // pred_fallthru
          _
      $region44: #{tpu_custom_call.1} parent=5 // pred_fallthru
        _
    $region6: #{tpu_custom_call.1} parent=1 // loop_footer
      %s21 = sadd.s32 1, %s17
    $region7: #{tpu_custom_call.1} parent=1 // loop_footer_branch
      %16 = sbr.rel target = $region3
    $region8: #{tpu_custom_call.1} parent=1 // loop_exit
      _
    %263 = vsyncpa [#allocation3], 1
    %s264 = scalar_lea.sflag [#allocation3], 1
    %265 = vsyncpa %s264, 1
    %266 = vsyncpa [#allocation6], 1
    %s267 = scalar_lea.sflag [#allocation6], 1
    %268 = vsyncpa %s267, 1
    %269 = vsyncpa [#allocation4], 1
    %s270 = scalar_lea.sflag [#allocation4], 1
    %271 = vsyncpa %s270, 1

</llo_original>
